<compile_context>
chip_gen: v7x
topology: tpu7x:2x2x1
jax: 0.10.0
libtpu: 0.0.40
codegen_flags: <defaults>
</compile_context>

<pallas_src>
from functools import partial

import jax
import jax.numpy as jnp
from jax import lax
from jax.experimental import pallas as pl
from jax.experimental.pallas import tpu as pltpu

_MiB = 1024 * 1024


# -----------------------------------------------------------------------------
# Chip-aware helpers (pure Python, trace-time only)
# -----------------------------------------------------------------------------
def _device_kind():
    try:
        return jax.devices()[0].device_kind.lower()
    except Exception:
        return ""


def _is_v7x():
    kind = _device_kind()
    return ("v7" in kind) or ("tpu7" in kind) or ("7x" in kind)


def _num_tensorcores():
    # v7x has 2 TensorCores per chip; v5e/v6e have 1.
    return 2 if _is_v7x() else 1


def _vpu_sqdist_max_d():
    # v5e/v6e: Gram kernel is HBM-write-bound, VPU broadcast path is free
    # filler up to d ~ 32.  v7x: 3.2 TB/s HBM makes it VALU-bound, so push the
    # d-contraction to the otherwise-idle MXU for all but tiny d.
    return 4 if _is_v7x() else 32


def _round_up(x, m):
    return -(-x // m) * m


def _pick_tile(n, pref, align, min_steps=1):
    """Largest legal tile <= pref; full-extent block when small.

    When min_steps > 1 (v7x megacore) and the extent allows it, split so a
    'parallel' grid axis gets at least `min_steps` steps, keeping alignment.
    """
    if n <= align:
        return n                      # full-extent block: always legal
    if n <= pref:
        if min_steps > 1:
            split = _round_up(-(-n // min_steps), align)
            if split < n:
                return split          # >= min_steps aligned grid steps
        return n                      # full-extent block
    return pref                       # pref is a multiple of align by contract


# -----------------------------------------------------------------------------
# In-kernel helpers
# -----------------------------------------------------------------------------
def _pairwise_sqdist(xa, xbt, d, max_vpu_d):
    """Squared distances between rows of xa (m, d) and columns of xbt (d, n).

    xb is pre-transposed in the wrapper, so no in-kernel transpose is needed.
    For small d the VPU broadcast path is used (exact, no cancellation); for
    larger d the cross term goes to the MXU.
    """
    if d <= max_vpu_d:
        d2 = None
        for c in range(d):  # static unroll, d is a Python int
            diff = xa[:, c:c + 1] - xbt[c:c + 1, :]   # (m, 1) - (1, n) -> (m, n)
            term = diff * diff
            d2 = term if d2 is None else d2 + term
        return d2
    # MXU path for large d: plain matmul, no transposes.
    sqa = jnp.sum(xa * xa, axis=-1, keepdims=True)      # (m, 1)
    sqb = jnp.sum(xbt * xbt, axis=0, keepdims=True)     # (1, n)
    cross = jnp.dot(xa, xbt, preferred_element_type=jnp.float32,
                    precision=lax.Precision.HIGHEST)
    return jnp.maximum(sqa + sqb - 2.0 * cross, 0.0)


# -----------------------------------------------------------------------------
# Pallas kernels
# -----------------------------------------------------------------------------
def _rbf_gram_kernel(x1_ref, x2t_ref, o_ref, *, s2, neg_half_inv_l2, d, max_vpu_d):
    """One (tm, tn) tile of the RBF Gram matrix."""
    x1 = x1_ref[...].astype(jnp.float32)      # (tm, d)
    x2t = x2t_ref[...].astype(jnp.float32)    # (d, tn)
    d2 = _pairwise_sqdist(x1, x2t, d, max_vpu_d)
    o_ref[...] = (s2 * jnp.exp(d2 * neg_half_inv_l2)).astype(o_ref.dtype)


def _kmt_fused_kernel(x1_ref, x2t_ref, kinvT_ref, kmt_ref, prod_ref,
                      *, s2, neg_half_inv_l2, d, max_vpu_d):
    """Transposed (lane-dense) layout for small M: one (M, tt) column tile of
    K_MT = K(loc1, loc2) and of K_MM_inv^T @ K_MT = (K_TM @ K_MM_inv)^T."""
    x1 = x1_ref[...].astype(jnp.float32)        # (M, d)   locations1 (resident)
    x2t = x2t_ref[...].astype(jnp.float32)      # (d, tt)  locations2^T tile
    d2 = _pairwise_sqdist(x1, x2t, d, max_vpu_d)            # (M, tt)
    k_mt = s2 * jnp.exp(d2 * neg_half_inv_l2)
    kmt_ref[...] = k_mt.astype(kmt_ref.dtype)
    kinv_t = kinvT_ref[...].astype(jnp.float32)  # (M, M) == K_MM_inv^T (resident)
    prod_ref[...] = jnp.dot(kinv_t, k_mt, preferred_element_type=jnp.float32,
                            precision=lax.Precision.HIGHEST).astype(prod_ref.dtype)


def _ktm_fused_kernel(x2_ref, x1t_ref, kinv_ref, ktm_ref, prod_ref,
                      *, s2, neg_half_inv_l2, d, max_vpu_d):
    """Direct layout for large M: one (tt, M) row tile of K_TM and K_TM@K_MM_inv."""
    x2 = x2_ref[...].astype(jnp.float32)      # (tt, d)  locations2 row tile
    x1t = x1t_ref[...].astype(jnp.float32)    # (d, M)   locations1^T (resident)
    d2 = _pairwise_sqdist(x2, x1t, d, max_vpu_d)            # (tt, M)
    k_tm = s2 * jnp.exp(d2 * neg_half_inv_l2)
    ktm_ref[...] = k_tm.astype(ktm_ref.dtype)
    kinv = kinv_ref[...].astype(jnp.float32)  # (M, M), VMEM resident
    prod_ref[...] = jnp.dot(k_tm, kinv, preferred_element_type=jnp.float32,
                            precision=lax.Precision.HIGHEST).astype(prod_ref.dtype)


# -----------------------------------------------------------------------------
# Wrappers (pallas_call plumbing)
# -----------------------------------------------------------------------------
def _const_spec(shape, single_buffer):
    """BlockSpec for an operand whose block never changes across the 1-D grid."""
    idx = lambda i: (0,) * len(shape)
    if single_buffer:
        # Constant index_map -> a single pipeline buffer is enough.
        return pl.BlockSpec(shape, idx, pipeline_mode=pl.Buffered(1))
    return pl.BlockSpec(shape, idx)


def rbf_gram(x1, x2, scale, lengthscale, *, tile_m=512, tile_n=1024):
    """forward(locations1, locations2) -> (N1, N2) Gram matrix (tiled)."""
    n1, d = x1.shape
    n2, d2_ = x2.shape
    assert d == d2_
    ncores = _num_tensorcores()
    max_vpu_d = _vpu_sqdist_max_d()
    tm = _pick_tile(n1, tile_m, 8, min_steps=ncores)
    tn = _pick_tile(n2, tile_n, 128)
    x2t = x2.T                                  # one-time XLA transpose
    s2 = float(scale) ** 2
    neg = -0.5 / (float(lengthscale) ** 2)
    # Double-buffered inputs + output, plus f32 intermediates.
    est = 2 * 4 * (tm * d + d * tn + tm * tn) + 2 * 4 * tm * tn
    vmem_limit = int(min(64 * _MiB, max(est + 4 * _MiB, 16 * _MiB)))
    return pl.pallas_call(
        partial(_rbf_gram_kernel, s2=s2, neg_half_inv_l2=neg, d=d,
                max_vpu_d=max_vpu_d),
        out_shape=jax.ShapeDtypeStruct((n1, n2), jnp.float32),
        grid=(pl.cdiv(n1, tm), pl.cdiv(n2, tn)),
        in_specs=[
            pl.BlockSpec((tm, d), lambda i, j: (i, 0)),
            pl.BlockSpec((d, tn), lambda i, j: (0, j)),
        ],
        out_specs=pl.BlockSpec((tm, tn), lambda i, j: (i, j)),
        compiler_params=pltpu.CompilerParams(
            dimension_semantics=("parallel", "parallel"),
            vmem_limit_bytes=vmem_limit),
    )(x1, x2t)


def rbf_cross_and_project(locations2, locations1, k_mm_inv, scale, lengthscale,
                          *, tile_t=512):
    """Fused forward(locations2, locations1) and K_TM @ K_MM_inv.

    Returns (K_TM, K_TM @ K_MM_inv), both of shape (T, M)."""
    t, d = locations2.shape
    m, d1 = locations1.shape
    assert d == d1 and k_mm_inv.shape == (m, m)
    s2 = float(scale) ** 2
    neg = -0.5 / (float(lengthscale) ** 2)
    ncores = _num_tensorcores()
    max_vpu_d = _vpu_sqdist_max_d()

    # Small inducing-point counts -> compute the transposed problem so the T
    # axis sits on lanes (unmasked, lane-dense stores; full vreg utilization).
    transposed = m < 128
    align = 128 if transposed else 8

    # VMEM budget for tile selection (conservative: assume 2 buffers even for
    # the resident operands) so the double-buffered pipeline fits v7x's 64 MiB.
    budget = 40 * _MiB
    fixed = 8 * (m * m + m * d)               # K_MM_inv + resident locations1
    per_t = 4 * (2 * d + 4 * m + 2 * m)       # loc2 slice (x2) + 2 outputs (x2) + temps
    tt_pref = tile_t
    while tt_pref > align and fixed + per_t * tt_pref > budget:
        tt_pref //= 2
    tt = _pick_tile(t, max(tt_pref, align), align, min_steps=ncores)
    vmem_limit = int(min(64 * _MiB, max(fixed + per_t * tt + 4 * _MiB, 16 * _MiB)))

    if transposed:
        x2t = locations2.T        # (d, T): T on the lane axis
        kinv_t = k_mm_inv.T       # so the kernel runs a plain (M,M)@(M,tt) matmul

        def build(single_buffer):
            return pl.pallas_call(
                partial(_kmt_fused_kernel, s2=s2, neg_half_inv_l2=neg, d=d,
                        max_vpu_d=max_vpu_d),
                out_shape=(jax.ShapeDtypeStruct((m, t), jnp.float32),
                           jax.ShapeDtypeStruct((m, t), jnp.float32)),
                grid=(pl.cdiv(t, tt),),
                in_specs=[
                    _const_spec((m, d), single_buffer),        # locations1
                    pl.BlockSpec((d, tt), lambda i: (0, i)),   # locations2^T tile
                    _const_spec((m, m), single_buffer),        # K_MM_inv^T
                ],
                out_specs=(pl.BlockSpec((m, tt), lambda i: (0, i)),
                           pl.BlockSpec((m, tt), lambda i: (0, i))),
                compiler_params=pltpu.CompilerParams(
                    dimension_semantics=("parallel",),
                    vmem_limit_bytes=vmem_limit),
            )

        try:
            k_mt, prod_mt = build(True)(locations1, x2t, kinv_t)
        except Exception:
            # TODO(synk): pipeline_mode=pl.Buffered(1) not supported by this jax
            # version; fall back to default double-buffered constant operands.
            k_mt, prod_mt = build(False)(locations1, x2t, kinv_t)
        return k_mt.T, prod_mt.T

    x1t = locations1.T            # (d, M)

    def build(single_buffer):
        return pl.pallas_call(
            partial(_ktm_fused_kernel, s2=s2, neg_half_inv_l2=neg, d=d,
                    max_vpu_d=max_vpu_d),
            out_shape=(jax.ShapeDtypeStruct((t, m), jnp.float32),
                       jax.ShapeDtypeStruct((t, m), jnp.float32)),
            grid=(pl.cdiv(t, tt),),
            in_specs=[
                pl.BlockSpec((tt, d), lambda i: (i, 0)),       # locations2 tile
                _const_spec((d, m), single_buffer),            # locations1^T
                _const_spec((m, m), single_buffer),            # K_MM_inv
            ],
            out_specs=(pl.BlockSpec((tt, m), lambda i: (i, 0)),
                       pl.BlockSpec((tt, m), lambda i: (i, 0))),
            compiler_params=pltpu.CompilerParams(
                dimension_semantics=("parallel",),
                vmem_limit_bytes=vmem_limit),
        )

    try:
        k_tm, prod = build(True)(locations2, x1t, k_mm_inv)
    except Exception:
        # TODO(synk): pipeline_mode=pl.Buffered(1) not supported by this jax
        # version; fall back to default double-buffered constant operands.
        k_tm, prod = build(False)(locations2, x1t, k_mm_inv)
    return k_tm, prod


# -----------------------------------------------------------------------------
# Kernel.posteriors — same sequence of ops as the PyTorch module
# -----------------------------------------------------------------------------
def kernel_posteriors(locations1, locations2, scale, lengthscale):
    K_MM = rbf_gram(locations1, locations1, scale, lengthscale)       # (M, M)
    M = K_MM.shape[-1]
    Id = 1e-6 * jnp.eye(M, dtype=K_MM.dtype)                          # diagonalize(ones)
    # TODO(synk): torch.linalg.inv has no clean Pallas equivalent; matrix
    # inversion stays in plain JAX (a Cholesky solve would be more stable, but
    # the explicit inverse matches the original module's semantics).
    K_MM_inv = jnp.linalg.inv(K_MM + Id)

    # RBF diagonal is exactly scale^2 independent of the inputs: K(x, x) = s^2.
    K_T = jnp.full((locations2.shape[0],), float(scale) ** 2, dtype=jnp.float32)

    K_TM, K_TM_K_MM_inv = rbf_cross_and_project(                      # (T, M) x2
        locations2, locations1, K_MM_inv, scale, lengthscale)
    return K_T, K_MM, K_MM_inv, K_TM, K_TM_K_MM_inv


# -----------------------------------------------------------------------------
# Demo
# -----------------------------------------------------------------------------
if __name__ == "__main__":
    key = jax.random.PRNGKey(0)
    k1, k2 = jax.random.split(key)

    M_IND, T, D = 8, 16, 2                 # inducing points, time points, loc dim
    locations1 = jax.random.normal(k1, (M_IND, D), dtype=jnp.float32)
    locations2 = jax.random.normal(k2, (T, D), dtype=jnp.float32)

    # Deterministic "parameters" of the (RBF) kernel.
    scale = 1.5
    lengthscale = 0.7

    outs = kernel_posteriors(locations1, locations2, scale, lengthscale)
    outs = jax.block_until_ready(outs)
    K_T, K_MM, K_MM_inv, K_TM, K_TM_K_MM_inv = outs

    # Lightweight sanity check against a pure-JAX reference.
    def ref_gram(a, b):
        d2 = jnp.sum((a[:, None, :] - b[None, :, :]) ** 2, axis=-1)
        return (scale ** 2) * jnp.exp(-0.5 * d2 / (lengthscale ** 2))

    ref_K_MM = ref_gram(locations1, locations1)
    ref_K_TM = ref_gram(locations2, locations1)

    assert K_T.shape == (T,) and K_MM.shape == (M_IND, M_IND)
    assert K_TM.shape == (T, M_IND) and K_TM_K_MM_inv.shape == (T, M_IND)
    assert jnp.allclose(K_MM, ref_K_MM, atol=1e-5)
    assert jnp.allclose(K_TM, ref_K_TM, atol=1e-5)
    assert jnp.allclose(K_T, jnp.diagonal(ref_gram(locations2, locations2)), atol=1e-6)
    # Check the fused in-kernel projection against an XLA matmul on the same
    # factors (avoids error amplification through separately-computed inverses).
    ref_prod = jnp.matmul(K_TM, K_MM_inv, precision=lax.Precision.HIGHEST)
    assert jnp.allclose(K_TM_K_MM_inv, ref_prod, atol=1e-4, rtol=1e-4)

    print("KERNEL_OK")
</pallas_src>

<mosaic_0001>
module attributes {stable_mosaic.version = 11 : i64} {
  func.func @_rbf_gram_kernel(%arg0: i32, %arg1: i32, %arg2: memref<8x2xf32, #tpu.memory_space<vmem>>, %arg3: memref<2x8xf32, #tpu.memory_space<vmem>>, %arg4: memref<8x8xf32, #tpu.memory_space<vmem>>) attributes {dimension_semantics = [#tpu.dimension_semantics<parallel>, #tpu.dimension_semantics<parallel>], iteration_bounds = array<i64: 1, 1>, scalar_prefetch = 0 : i64, scratch_operands = 0 : i64, tpu.core_type = #tpu.core_type<tc>, window_params = [{transform_indices = @transform_0, window_bounds = array<i64: 8, 2>}, {transform_indices = @transform_1, window_bounds = array<i64: 2, 8>}, {transform_indices = @transform_2, window_bounds = array<i64: 8, 8>}]} {
    %c0 = arith.constant 0 : index
    %c0_0 = arith.constant 0 : index
    %0 = vector.load %arg2[%c0, %c0_0] : memref<8x2xf32, #tpu.memory_space<vmem>>, vector<8x2xf32>
    %c0_1 = arith.constant 0 : index
    %c0_2 = arith.constant 0 : index
    %1 = vector.load %arg3[%c0_1, %c0_2] : memref<2x8xf32, #tpu.memory_space<vmem>>, vector<2x8xf32>
    %2 = vector.extract_strided_slice %0 {offsets = [0, 0], sizes = [8, 1], strides = [1, 1]} : vector<8x2xf32> to vector<8x1xf32>
    %3 = vector.extract_strided_slice %1 {offsets = [0, 0], sizes = [1, 8], strides = [1, 1]} : vector<2x8xf32> to vector<1x8xf32>
    %4 = vector.broadcast %2 : vector<8x1xf32> to vector<8x8xf32>
    %5 = vector.broadcast %3 : vector<1x8xf32> to vector<8x8xf32>
    %6 = arith.subf %4, %5 : vector<8x8xf32>
    %7 = arith.mulf %6, %6 : vector<8x8xf32>
    %8 = vector.extract_strided_slice %0 {offsets = [0, 1], sizes = [8, 1], strides = [1, 1]} : vector<8x2xf32> to vector<8x1xf32>
    %9 = vector.extract_strided_slice %1 {offsets = [1, 0], sizes = [1, 8], strides = [1, 1]} : vector<2x8xf32> to vector<1x8xf32>
    %10 = vector.broadcast %8 : vector<8x1xf32> to vector<8x8xf32>
    %11 = vector.broadcast %9 : vector<1x8xf32> to vector<8x8xf32>
    %12 = arith.subf %10, %11 : vector<8x8xf32>
    %13 = arith.mulf %12, %12 : vector<8x8xf32>
    %14 = arith.addf %7, %13 : vector<8x8xf32>
    %cst = arith.constant -1.02040815 : f32
    %15 = vector.broadcast %cst : f32 to vector<8x8xf32>
    %16 = arith.mulf %14, %15 : vector<8x8xf32>
    %17 = math.exp %16 : vector<8x8xf32>
    %cst_3 = arith.constant 2.250000e+00 : f32
    %18 = vector.broadcast %cst_3 : f32 to vector<8x8xf32>
    %19 = arith.mulf %18, %17 : vector<8x8xf32>
    %c0_4 = arith.constant 0 : index
    %c0_5 = arith.constant 0 : index
    %20 = vector.load %arg4[%c0_4, %c0_5] : memref<8x8xf32, #tpu.memory_space<vmem>>, vector<8x8xf32>
    tpu.vector_store %arg4[%c0_4, %c0_5], %19 {strides = array<i32>} : memref<8x8xf32, #tpu.memory_space<vmem>>, vector<8x8xf32>,
    return
  }
  func.func @transform_0(%arg0: i32, %arg1: i32) -> (i32, i32) {
    %c0_i32 = arith.constant 0 : i32
    %c0_i32_0 = arith.constant 0 : i32
    return %arg0, %c0_i32 : i32, i32
  }
  func.func @transform_1(%arg0: i32, %arg1: i32) -> (i32, i32) {
    %c0_i32 = arith.constant 0 : i32
    %c0_i32_0 = arith.constant 0 : i32
    return %c0_i32, %arg1 : i32, i32
  }
  func.func @transform_2(%arg0: i32, %arg1: i32) -> (i32, i32) {
    %c0_i32 = arith.constant 0 : i32
    return %arg0, %arg1 : i32, i32
  }
}

</mosaic_0001>

<llo_original>
// kernel: tpu_custom_call.1
$region0: #{tpu_custom_call.1}
  #allocation0 [shape = 'u32[]', space=smem, size = 0x4, offset = 0x4, fixed_abs, tag = 'smem constant byte address 0x4 - core index']
  #allocation1 [shape = 'u32[144,128]{1,0:T(1,128)}', space=vmem, size = 0x12000, scoped, tag = 'internal scratch']
  %s0 = inlined_call_operand.vmem [shape: f32[8,2], index: 0, kind: input, shape index: {}]
  %s1 = inlined_call_operand.vmem [shape: f32[2,8], index: 1, kind: input, shape index: {}]
  %s2 = inlined_call_operand.hbm [shape: f32[8,8], index: 2, kind: output, shape index: {}]
  %s3 = sld [smem:[#allocation0]]
  $region18: #{tpu_custom_call.1} parent=0
    _
  %s5 = ssub.s32 1, %s3
  %s6 = scalar_select 0, %s5, %s3
  $region1: #{tpu_custom_call.1} parent=0
    #allocation2 [shape = 'u8[4096]{0}', space=vmem, size = 0x1000, scoped, tag = 'output window, operand 0, single buffered']
    #allocation3 [shape = 's32[1]{0}', space=sflag, size = 0x4, scoped, tag = 'scoped memory for tpu_custom_call.1']
    %7 = vsyncpa [#allocation3], 0
    // Predicated region
    $region2: #{tpu_custom_call.1} parent=1 // pred_check
      _
    $region3: #{tpu_custom_call.1} parent=1 // pred_check_branch
      %9 = sbr.rel (0) target = $region5
    $region4: #{tpu_custom_call.1} parent=1 // pred_region
      _
    $region5: #{tpu_custom_call.1} parent=1 // pred_fallthru
      _
    // Predicated region
    $region6: #{tpu_custom_call.1} parent=1 // pred_check
      _
    $region7: #{tpu_custom_call.1} parent=1 // pred_check_branch
      %11 = sbr.rel (0) target = $region9
    $region8: #{tpu_custom_call.1} parent=1 // pred_region
      _
    $region9: #{tpu_custom_call.1} parent=1 // pred_fallthru
      _
    %v12 = vld [vmem:[%s0] sm:$0xff]
    %v13 = vld [vmem:[%s1] sm:$0x3]
    %15 = vset.pattern.permute.xlu0 0
    %16 = vperm.xlu0 %15, %v12
    %v17 = vpop.permute.xlu0 %16
    %v19 = vlaneseq
    %v20 = vshrl.u32 %v19, 7
    %v21 = vsub.s32 0, %v20
    %v22 = vrot.slane %v13, %v21
    %v23 = vsub.f32 %v17, %v22
    %v24 = vmul.f32 %v23, %v23
    %25 = vset.pattern.permute.xlu0 1
    %26 = vperm.xlu0 %25, %v12
    %v27 = vpop.permute.xlu0 %26
    %v29 = vlaneseq
    %v30 = vshrl.u32 %v29, 7
    %v31 = vsub.s32 1, %v30
    %v32 = vrot.slane %v13, %v31
    %v33 = vsub.f32 %v27, %v32
    %v34 = vmul.f32 %v33, %v33
    %v35 = vadd.f32 %v24, %v34
    %v36 = vmul.f32 %v35, -1.0204082
    %v37 = vmul.f32 %v36, 1.442695
    %v38 = vpow.pop %v37
    %v39 = vmul.f32 %v38, 2.25
    %vm40 = vcmask 64512
    %41 = vst.msk [vmem:[#allocation2] sm:$0xff] %vm40, %v39
    // Predicated region
    $region10: #{tpu_custom_call.1} parent=1 // pred_check
      _
    $region11: #{tpu_custom_call.1} parent=1 // pred_check_branch
      %43 = sbr.rel (0) target = $region13
    $region12: #{tpu_custom_call.1} parent=1 // pred_region
      %s45 = ssub.s32 128, 128
      %46 = vsyncadd [#allocation3], %s45
      %s48 = sshll.u32 [#allocation2], 4
      %s49 = int_to_ptr.vmem [resolvable:$true] %s48
      %51 = dma.vmem_to_hbm [thread:$0]  %s49, 128, %s2, [#allocation3]
    $region13: #{tpu_custom_call.1} parent=1 // pred_fallthru
      _
    // Predicated region
    $region14: #{tpu_custom_call.1} parent=1 // pred_check
      _
    $region15: #{tpu_custom_call.1} parent=1 // pred_check_branch
      %53 = sbr.rel (0) target = $region17
    $region16: #{tpu_custom_call.1} parent=1 // pred_region
      %54 = dma.done [#allocation3], 128
    $region17: #{tpu_custom_call.1} parent=1 // pred_fallthru
      _
    %55 = vsyncpa [#allocation3], 1

</llo_original>
